<compile_context>
chip_gen: v5e
topology: v5e:2x2
jax: 0.10.0
libtpu: 0.0.40
codegen_flags: <defaults>
</compile_context>

<pallas_src>
import functools

import jax
import jax.numpy as jnp
import numpy as np
from jax.experimental import pallas as pl
from jax.experimental.pallas import tpu as pltpu


def _round_up(x, m):
    return (x + m - 1) // m * m


def _speech_deconv_kernel(x_ref, l_ref, e_ref, b_ref, o_ref, *,
                          T_tile, T_in_pad, KW, Cin, F_out, Chalf, activation):
    """One (batch, T-tile) grid step.

    x_ref: (1, Cin, T_pad, F_pad)                 padded NCHW input (resident per batch)
    l_ref: (2, Chalf*T_tile, KW*Cin*T_in_pad)     Toeplitz-expanded conv weights
    e_ref: (2, F_out, 2*F_out)                    freq-interleave selection matrices
    b_ref: (Chalf*T_tile, 2*F_out)                pre-interleaved bias slab
    o_ref: (1, Chalf, T_tile, 2*F_out)            final-layout output tile (lane-dense)
    """
    t0 = pl.multiple_of(pl.program_id(1) * T_tile, T_tile)

    # im2col RHS: Cin halo-row loads + static lane shifts, one sublane-aligned
    # concat (T_in_pad is a multiple of 8).  Order (kw, cin, ta) matches l_ref.
    rows = [x_ref[0, c, pl.ds(t0, T_in_pad), :] for c in range(Cin)]
    pieces = [rows[c][:, kw:kw + F_out] for kw in range(KW) for c in range(Cin)]
    xs = jnp.concatenate(pieces, axis=0)               # (KW*Cin*T_in_pad, F_out)

    # Conv for the two channel-pair groups: one big MXU matmul each.
    # M = Chalf*T_tile, K = KW*Cin*T_in_pad, N = F_out; f32 accumulation.
    r0 = jnp.dot(l_ref[0], xs, preferred_element_type=jnp.float32)
    r1 = jnp.dot(l_ref[1], xs, preferred_element_type=jnp.float32)

    # Channel-pair -> frequency interleave on the MXU with constant 0/1
    # selection matrices (exact), plus bias: y[m, 2f+g] = r_g[m, f] + bias.
    y = (jnp.dot(r0, e_ref[0], preferred_element_type=jnp.float32)
         + jnp.dot(r1, e_ref[1], preferred_element_type=jnp.float32)
         + b_ref[...])                                  # (Chalf*T_tile, 2*F_out)

    if activation == "relu":
        y = jnp.maximum(y, 0.0)
    elif activation == "sigmoid":
        y = jax.nn.sigmoid(y)

    y = y.astype(o_ref.dtype)
    for k in range(Chalf):                              # Chalf is small & static
        o_ref[0, k, :, :] = y[k * T_tile:(k + 1) * T_tile, :]


def speech_deconv(x_nchw, weight_oihw, bias, *, padding=(1, 1), activation=None,
                  t_tile=None, compute_dtype=None):
    """Pallas implementation of SpeechDeConv.forward.

    x_nchw:      (B, Cin, T, F)        PyTorch NCHW input
    weight_oihw: (Cout, Cin, KH, KW)   PyTorch Conv2d weight
    bias:        (Cout,)
    returns:     (B, Cout//2, T_out, 2*F_out)   (final PyTorch layout)
    """
    B, Cin, T, F = x_nchw.shape
    Cout, Cin_w, KH, KW = weight_oihw.shape
    assert Cin_w == Cin and Cout % 2 == 0
    ph, pw = padding
    T_out = T + 2 * ph - KH + 1
    F_out = F + 2 * pw - KW + 1
    Chalf = Cout // 2

    # ---- T tiling (grid axis) ----
    if t_tile is None:
        if T_out % 8 == 0:
            t_tile = 8
            for cand in range(8, min(T_out, 64) + 1, 8):
                if T_out % cand == 0:
                    t_tile = cand
        else:
            t_tile = T_out
    assert T_out % t_tile == 0, (T_out, t_tile)
    n_t = T_out // t_tile
    T_in = t_tile + KH - 1
    T_in_pad = _round_up(T_in, 8)              # sublane-aligned halo slab
    M = Chalf * t_tile
    Kdim = KW * Cin * T_in_pad

    cdt = compute_dtype or x_nchw.dtype        # bf16 here on v6e/v7x if desired

    # ---- only HBM pre-pass: zero-pad T and F of the NCHW input ----
    # (the extra bottom-T rows keep every tile's halo slab sublane-aligned;
    #  they only ever meet structurally-zero weight rows.)
    pad_t_total = T_out + (T_in_pad - t_tile)
    pad_bottom = pad_t_total - T - ph
    x_pad = jnp.pad(x_nchw, ((0, 0), (0, 0), (ph, pad_bottom), (pw, pw)))
    x_pad = x_pad.astype(cdt)
    T_padded, F_padded = x_pad.shape[2], x_pad.shape[3]

    # ---- host-side constant operands (tiny) ----
    W = weight_oihw.astype(jnp.float32)
    t_idx = jnp.arange(t_tile)
    ta_idx = jnp.arange(T_in_pad)
    kh_rel = ta_idx[None, :] - t_idx[:, None]               # (t_tile, T_in_pad)
    valid = (kh_rel >= 0) & (kh_rel < KH)
    kh_clip = jnp.clip(kh_rel, 0, KH - 1)
    # TB[co, cin, t, ta, kw] = W[co, cin, ta - t, kw]  (0 outside the kernel)
    TB = jnp.where(valid[None, None, :, :, None], W[:, :, kh_clip, :], 0.0)
    L = TB.transpose(0, 2, 4, 1, 3).reshape(Cout, t_tile, Kdim)
    L = L.reshape(2, Chalf, t_tile, Kdim).reshape(2, M, Kdim).astype(cdt)

    f_ids = jnp.arange(F_out)
    n_ids = jnp.arange(2 * F_out)
    E = jnp.stack([(n_ids[None, :] == 2 * f_ids[:, None] + g).astype(cdt)
                   for g in (0, 1)], axis=0)                # (2, F_out, 2*F_out)

    k_of_m = jnp.arange(M) // t_tile
    g_of_n = n_ids % 2
    b_slab = bias.astype(jnp.float32)[g_of_n[None, :] * Chalf + k_of_m[:, None]]

    kernel = functools.partial(
        _speech_deconv_kernel, T_tile=t_tile, T_in_pad=T_in_pad, KW=KW,
        Cin=Cin, F_out=F_out, Chalf=Chalf, activation=activation)

    out = pl.pallas_call(
        kernel,
        out_shape=jax.ShapeDtypeStruct((B, Chalf, T_out, 2 * F_out), x_nchw.dtype),
        grid=(B, n_t),
        in_specs=[
            pl.BlockSpec((1, Cin, T_padded, F_padded), lambda b, ti: (b, 0, 0, 0)),
            pl.BlockSpec((2, M, Kdim), lambda b, ti: (0, 0, 0)),
            pl.BlockSpec((2, F_out, 2 * F_out), lambda b, ti: (0, 0, 0)),
            pl.BlockSpec((M, 2 * F_out), lambda b, ti: (0, 0)),
        ],
        out_specs=pl.BlockSpec((1, Chalf, t_tile, 2 * F_out),
                               lambda b, ti: (b, 0, ti, 0)),
        compiler_params=pltpu.CompilerParams(
            dimension_semantics=("parallel", "arbitrary")),
    )(x_pad, L, E, b_slab)
    return out


def speech_deconv_ref(x_nchw, weight_oihw, bias, *, padding=(1, 1), activation=None):
    """Pure-JAX reference mirroring the PyTorch module exactly."""
    ph, pw = padding
    res = jax.lax.conv_general_dilated(
        x_nchw, weight_oihw, window_strides=(1, 1),
        padding=((ph, ph), (pw, pw)),
        dimension_numbers=("NCHW", "OIHW", "NCHW"))
    res = res + bias.reshape(1, -1, 1, 1)
    if activation == "relu":
        res = jnp.maximum(res, 0.0)
    elif activation == "sigmoid":
        res = jax.nn.sigmoid(res)
    b, c, t, f = res.shape
    res = res.reshape(b, 2, c // 2, t, f)
    res = jnp.transpose(res, (0, 2, 3, 4, 1))
    res = res.reshape(b, c // 2, t, -1)
    return res


if __name__ == "__main__":
    # Small shapes consistent with the module (NCHW input, even out_channels).
    B, Cin, T, F = 2, 4, 16, 16
    Cout, KH, KW = 8, 3, 3
    padding = (1, 1)
    activation = None  # module default out_ac=None

    key = jax.random.PRNGKey(0)
    k_x, k_w, k_b = jax.random.split(key, 3)
    x = jax.random.normal(k_x, (B, Cin, T, F), dtype=jnp.float32)
    weight = jax.random.normal(k_w, (Cout, Cin, KH, KW), dtype=jnp.float32) * 0.1
    bias = jax.random.normal(k_b, (Cout,), dtype=jnp.float32) * 0.1

    # t_tile=8 -> 2 T-tiles per batch element, exercising the T grid axis.
    out = speech_deconv(x, weight, bias, padding=padding,
                        activation=activation, t_tile=8)
    out = jax.block_until_ready(out)

    ref = speech_deconv_ref(x, weight, bias, padding=padding, activation=activation)
    ref = jax.block_until_ready(ref)

    assert out.shape == (B, Cout // 2, T, 2 * F), out.shape
    np.testing.assert_allclose(np.asarray(out), np.asarray(ref),
                               rtol=1e-4, atol=1e-4)
    print("KERNEL_OK")
</pallas_src>

<mosaic_0001>
module attributes {stable_mosaic.version = 11 : i64} {
  func.func @_speech_deconv_kernel(%arg0: i32, %arg1: i32, %arg2: memref<1x4x24x18xf32, #tpu.memory_space<vmem>>, %arg3: memref<2x32x192xf32, #tpu.memory_space<vmem>>, %arg4: memref<2x16x32xf32, #tpu.memory_space<vmem>>, %arg5: memref<32x32xf32, #tpu.memory_space<vmem>>, %arg6: memref<1x4x8x32xf32, #tpu.memory_space<vmem>>) attributes {dimension_semantics = [#tpu.dimension_semantics<parallel>, #tpu.dimension_semantics<arbitrary>], iteration_bounds = array<i64: 2, 2>, scalar_prefetch = 0 : i64, scratch_operands = 0 : i64, tpu.core_type = #tpu.core_type<tc>, window_params = [{transform_indices = @transform_0, window_bounds = array<i64: 1, 4, 24, 18>}, {pipeline_mode = #tpu.pipeline_mode<synchronous>, transform_indices = @transform_1, window_bounds = array<i64: 2, 32, 192>}, {pipeline_mode = #tpu.pipeline_mode<synchronous>, transform_indices = @transform_2, window_bounds = array<i64: 2, 16, 32>}, {pipeline_mode = #tpu.pipeline_mode<synchronous>, transform_indices = @transform_3, window_bounds = array<i64: 32, 32>}, {transform_indices = @transform_4, window_bounds = array<i64: 1, 4, 8, 32>}]} {
    %c8_i32 = arith.constant 8 : i32
    %0 = arith.muli %arg1, %c8_i32 : i32
    %1 = tpu.assume_multiple %0, 8 : i32
    %c0 = arith.constant 0 : index
    %c0_0 = arith.constant 0 : index
    %2 = arith.index_cast %1 : i32 to index
    %c0_1 = arith.constant 0 : index
    %3 = vector.load %arg2[%c0, %c0_0, %2, %c0_1] : memref<1x4x24x18xf32, #tpu.memory_space<vmem>>, vector<1x1x16x18xf32>
    %4 = vector.shape_cast %3 : vector<1x1x16x18xf32> to vector<16x18xf32>
    %c0_2 = arith.constant 0 : index
    %c1 = arith.constant 1 : index
    %5 = arith.index_cast %1 : i32 to index
    %c0_3 = arith.constant 0 : index
    %6 = vector.load %arg2[%c0_2, %c1, %5, %c0_3] : memref<1x4x24x18xf32, #tpu.memory_space<vmem>>, vector<1x1x16x18xf32>
    %7 = vector.shape_cast %6 : vector<1x1x16x18xf32> to vector<16x18xf32>
    %c0_4 = arith.constant 0 : index
    %c2 = arith.constant 2 : index
    %8 = arith.index_cast %1 : i32 to index
    %c0_5 = arith.constant 0 : index
    %9 = vector.load %arg2[%c0_4, %c2, %8, %c0_5] : memref<1x4x24x18xf32, #tpu.memory_space<vmem>>, vector<1x1x16x18xf32>
    %10 = vector.shape_cast %9 : vector<1x1x16x18xf32> to vector<16x18xf32>
    %c0_6 = arith.constant 0 : index
    %c3 = arith.constant 3 : index
    %11 = arith.index_cast %1 : i32 to index
    %c0_7 = arith.constant 0 : index
    %12 = vector.load %arg2[%c0_6, %c3, %11, %c0_7] : memref<1x4x24x18xf32, #tpu.memory_space<vmem>>, vector<1x1x16x18xf32>
    %13 = vector.shape_cast %12 : vector<1x1x16x18xf32> to vector<16x18xf32>
    %14 = vector.extract_strided_slice %4 {offsets = [0, 0], sizes = [16, 16], strides = [1, 1]} : vector<16x18xf32> to vector<16x16xf32>
    %15 = vector.extract_strided_slice %7 {offsets = [0, 0], sizes = [16, 16], strides = [1, 1]} : vector<16x18xf32> to vector<16x16xf32>
    %16 = vector.extract_strided_slice %10 {offsets = [0, 0], sizes = [16, 16], strides = [1, 1]} : vector<16x18xf32> to vector<16x16xf32>
    %17 = vector.extract_strided_slice %13 {offsets = [0, 0], sizes = [16, 16], strides = [1, 1]} : vector<16x18xf32> to vector<16x16xf32>
    %18 = vector.extract_strided_slice %4 {offsets = [0, 1], sizes = [16, 16], strides = [1, 1]} : vector<16x18xf32> to vector<16x16xf32>
    %19 = vector.extract_strided_slice %7 {offsets = [0, 1], sizes = [16, 16], strides = [1, 1]} : vector<16x18xf32> to vector<16x16xf32>
    %20 = vector.extract_strided_slice %10 {offsets = [0, 1], sizes = [16, 16], strides = [1, 1]} : vector<16x18xf32> to vector<16x16xf32>
    %21 = vector.extract_strided_slice %13 {offsets = [0, 1], sizes = [16, 16], strides = [1, 1]} : vector<16x18xf32> to vector<16x16xf32>
    %22 = vector.extract_strided_slice %4 {offsets = [0, 2], sizes = [16, 16], strides = [1, 1]} : vector<16x18xf32> to vector<16x16xf32>
    %23 = vector.extract_strided_slice %7 {offsets = [0, 2], sizes = [16, 16], strides = [1, 1]} : vector<16x18xf32> to vector<16x16xf32>
    %24 = vector.extract_strided_slice %10 {offsets = [0, 2], sizes = [16, 16], strides = [1, 1]} : vector<16x18xf32> to vector<16x16xf32>
    %25 = vector.extract_strided_slice %13 {offsets = [0, 2], sizes = [16, 16], strides = [1, 1]} : vector<16x18xf32> to vector<16x16xf32>
    %26 = tpu.concatenate %14, %15, %16, %17, %18, %19, %20, %21, %22, %23, %24, %25 in 0 : vector<16x16xf32>, vector<16x16xf32>, vector<16x16xf32>, vector<16x16xf32>, vector<16x16xf32>, vector<16x16xf32>, vector<16x16xf32>, vector<16x16xf32>, vector<16x16xf32>, vector<16x16xf32>, vector<16x16xf32>, vector<16x16xf32> -> vector<192x16xf32>
    %c0_8 = arith.constant 0 : index
    %c0_9 = arith.constant 0 : index
    %c0_10 = arith.constant 0 : index
    %27 = vector.load %arg3[%c0_8, %c0_9, %c0_10] : memref<2x32x192xf32, #tpu.memory_space<vmem>>, vector<1x32x192xf32>
    %28 = vector.shape_cast %27 : vector<1x32x192xf32> to vector<32x192xf32>
    %cst = arith.constant dense<0.000000e+00> : vector<32x16xf32>
    %29 = tpu.matmul %28, %26, %cst {dimension_numbers = #tpu.dot_dimension_numbers<[1], [0], [0], [1], [0, 0, 1, 1], [], []>} : vector<32x192xf32>, vector<192x16xf32>, vector<32x16xf32> -> vector<32x16xf32>
    %c1_11 = arith.constant 1 : index
    %c0_12 = arith.constant 0 : index
    %c0_13 = arith.constant 0 : index
    %30 = vector.load %arg3[%c1_11, %c0_12, %c0_13] : memref<2x32x192xf32, #tpu.memory_space<vmem>>, vector<1x32x192xf32>
    %31 = vector.shape_cast %30 : vector<1x32x192xf32> to vector<32x192xf32>
    %cst_14 = arith.constant dense<0.000000e+00> : vector<32x16xf32>
    %32 = tpu.matmul %31, %26, %cst_14 {dimension_numbers = #tpu.dot_dimension_numbers<[1], [0], [0], [1], [0, 0, 1, 1], [], []>} : vector<32x192xf32>, vector<192x16xf32>, vector<32x16xf32> -> vector<32x16xf32>
    %c0_15 = arith.constant 0 : index
    %c0_16 = arith.constant 0 : index
    %c0_17 = arith.constant 0 : index
    %33 = vector.load %arg4[%c0_15, %c0_16, %c0_17] : memref<2x16x32xf32, #tpu.memory_space<vmem>>, vector<1x16x32xf32>
    %34 = vector.shape_cast %33 : vector<1x16x32xf32> to vector<16x32xf32>
    %cst_18 = arith.constant dense<0.000000e+00> : vector<32x32xf32>
    %35 = tpu.matmul %29, %34, %cst_18 {dimension_numbers = #tpu.dot_dimension_numbers<[1], [0], [0], [1], [0, 0, 1, 1], [], []>} : vector<32x16xf32>, vector<16x32xf32>, vector<32x32xf32> -> vector<32x32xf32>
    %c1_19 = arith.constant 1 : index
    %c0_20 = arith.constant 0 : index
    %c0_21 = arith.constant 0 : index
    %36 = vector.load %arg4[%c1_19, %c0_20, %c0_21] : memref<2x16x32xf32, #tpu.memory_space<vmem>>, vector<1x16x32xf32>
    %37 = vector.shape_cast %36 : vector<1x16x32xf32> to vector<16x32xf32>
    %cst_22 = arith.constant dense<0.000000e+00> : vector<32x32xf32>
    %38 = tpu.matmul %32, %37, %cst_22 {dimension_numbers = #tpu.dot_dimension_numbers<[1], [0], [0], [1], [0, 0, 1, 1], [], []>} : vector<32x16xf32>, vector<16x32xf32>, vector<32x32xf32> -> vector<32x32xf32>
    %39 = arith.addf %35, %38 : vector<32x32xf32>
    %c0_23 = arith.constant 0 : index
    %c0_24 = arith.constant 0 : index
    %40 = vector.load %arg5[%c0_23, %c0_24] : memref<32x32xf32, #tpu.memory_space<vmem>>, vector<32x32xf32>
    %41 = arith.addf %39, %40 : vector<32x32xf32>
    %42 = vector.extract_strided_slice %41 {offsets = [0, 0], sizes = [8, 32], strides = [1, 1]} : vector<32x32xf32> to vector<8x32xf32>
    %c0_25 = arith.constant 0 : index
    %c0_26 = arith.constant 0 : index
    %c0_27 = arith.constant 0 : index
    %c0_28 = arith.constant 0 : index
    %43 = vector.load %arg6[%c0_25, %c0_26, %c0_27, %c0_28] : memref<1x4x8x32xf32, #tpu.memory_space<vmem>>, vector<1x1x8x32xf32>
    %44 = vector.shape_cast %43 : vector<1x1x8x32xf32> to vector<8x32xf32>
    %45 = vector.shape_cast %42 : vector<8x32xf32> to vector<1x1x8x32xf32>
    tpu.vector_store %arg6[%c0_25, %c0_26, %c0_27, %c0_28], %45 {strides = array<i32>} : memref<1x4x8x32xf32, #tpu.memory_space<vmem>>, vector<1x1x8x32xf32>,
    %46 = vector.extract_strided_slice %41 {offsets = [8, 0], sizes = [8, 32], strides = [1, 1]} : vector<32x32xf32> to vector<8x32xf32>
    %c0_29 = arith.constant 0 : index
    %c1_30 = arith.constant 1 : index
    %c0_31 = arith.constant 0 : index
    %c0_32 = arith.constant 0 : index
    %47 = vector.load %arg6[%c0_29, %c1_30, %c0_31, %c0_32] : memref<1x4x8x32xf32, #tpu.memory_space<vmem>>, vector<1x1x8x32xf32>
    %48 = vector.shape_cast %47 : vector<1x1x8x32xf32> to vector<8x32xf32>
    %49 = vector.shape_cast %46 : vector<8x32xf32> to vector<1x1x8x32xf32>
    tpu.vector_store %arg6[%c0_29, %c1_30, %c0_31, %c0_32], %49 {strides = array<i32>} : memref<1x4x8x32xf32, #tpu.memory_space<vmem>>, vector<1x1x8x32xf32>,
    %50 = vector.extract_strided_slice %41 {offsets = [16, 0], sizes = [8, 32], strides = [1, 1]} : vector<32x32xf32> to vector<8x32xf32>
    %c0_33 = arith.constant 0 : index
    %c2_34 = arith.constant 2 : index
    %c0_35 = arith.constant 0 : index
    %c0_36 = arith.constant 0 : index
    %51 = vector.load %arg6[%c0_33, %c2_34, %c0_35, %c0_36] : memref<1x4x8x32xf32, #tpu.memory_space<vmem>>, vector<1x1x8x32xf32>
    %52 = vector.shape_cast %51 : vector<1x1x8x32xf32> to vector<8x32xf32>
    %53 = vector.shape_cast %50 : vector<8x32xf32> to vector<1x1x8x32xf32>
    tpu.vector_store %arg6[%c0_33, %c2_34, %c0_35, %c0_36], %53 {strides = array<i32>} : memref<1x4x8x32xf32, #tpu.memory_space<vmem>>, vector<1x1x8x32xf32>,
    %54 = vector.extract_strided_slice %41 {offsets = [24, 0], sizes = [8, 32], strides = [1, 1]} : vector<32x32xf32> to vector<8x32xf32>
    %c0_37 = arith.constant 0 : index
    %c3_38 = arith.constant 3 : index
    %c0_39 = arith.constant 0 : index
    %c0_40 = arith.constant 0 : index
    %55 = vector.load %arg6[%c0_37, %c3_38, %c0_39, %c0_40] : memref<1x4x8x32xf32, #tpu.memory_space<vmem>>, vector<1x1x8x32xf32>
    %56 = vector.shape_cast %55 : vector<1x1x8x32xf32> to vector<8x32xf32>
    %57 = vector.shape_cast %54 : vector<8x32xf32> to vector<1x1x8x32xf32>
    tpu.vector_store %arg6[%c0_37, %c3_38, %c0_39, %c0_40], %57 {strides = array<i32>} : memref<1x4x8x32xf32, #tpu.memory_space<vmem>>, vector<1x1x8x32xf32>,
    return
  }
  func.func @transform_0(%arg0: i32, %arg1: i32) -> (i32, i32, i32, i32) {
    %c0_i32 = arith.constant 0 : i32
    %c0_i32_0 = arith.constant 0 : i32
    %c0_i32_1 = arith.constant 0 : i32
    %c0_i32_2 = arith.constant 0 : i32
    return %arg0, %c0_i32, %c0_i32_0, %c0_i32_1 : i32, i32, i32, i32
  }
  func.func @transform_1(%arg0: i32, %arg1: i32) -> (i32, i32, i32) {
    %c0_i32 = arith.constant 0 : i32
    %c0_i32_0 = arith.constant 0 : i32
    %c0_i32_1 = arith.constant 0 : i32
    %c0_i32_2 = arith.constant 0 : i32
    return %c0_i32, %c0_i32_0, %c0_i32_1 : i32, i32, i32
  }
  func.func @transform_2(%arg0: i32, %arg1: i32) -> (i32, i32, i32) {
    %c0_i32 = arith.constant 0 : i32
    %c0_i32_0 = arith.constant 0 : i32
    %c0_i32_1 = arith.constant 0 : i32
    %c0_i32_2 = arith.constant 0 : i32
    return %c0_i32, %c0_i32_0, %c0_i32_1 : i32, i32, i32
  }
  func.func @transform_3(%arg0: i32, %arg1: i32) -> (i32, i32) {
    %c0_i32 = arith.constant 0 : i32
    %c0_i32_0 = arith.constant 0 : i32
    %c0_i32_1 = arith.constant 0 : i32
    return %c0_i32, %c0_i32_0 : i32, i32
  }
  func.func @transform_4(%arg0: i32, %arg1: i32) -> (i32, i32, i32, i32) {
    %c0_i32 = arith.constant 0 : i32
    %c0_i32_0 = arith.constant 0 : i32
    %c0_i32_1 = arith.constant 0 : i32
    return %arg0, %c0_i32, %arg1, %c0_i32_0 : i32, i32, i32, i32
  }
}

</mosaic_0001>

<llo_original>
// kernel: tpu_custom_call.1
$region0: #{tpu_custom_call.1}
  #allocation0 [shape = 'u32[]', space=smem, size = 0x4, offset = 0x4, fixed_abs, tag = 'smem constant byte address 0x4 - core index']
  #allocation1 [shape = 'u32[72,128]{1,0:T(1,128)}', space=vmem, size = 0x9000, scoped, tag = 'internal scratch']
  %s0 = inlined_call_operand.vmem [shape: f32[2,4,24,18], index: 0, kind: input, shape index: {}]
  %s1 = inlined_call_operand.vmem [shape: f32[2,32,192], index: 1, kind: input, shape index: {}]
  %s2 = inlined_call_operand.vmem [shape: f32[2,16,32], index: 2, kind: input, shape index: {}]
  %s3 = inlined_call_operand.vmem [shape: f32[32,32], index: 3, kind: input, shape index: {}]
  %s4 = inlined_call_operand.hbm [shape: f32[2,4,16,32], index: 4, kind: output, shape index: {}]
  %s5 = sld [smem:[#allocation0]]
  $region49: #{tpu_custom_call.1} parent=0
    _
  %s7 = ssub.s32 1, %s5
  %s8 = scalar_select 0, %s7, %s5
  $region1: #{tpu_custom_call.1} parent=0
    #allocation2 [shape = 'u8[32768]{0}', space=vmem, size = 0x8000, scoped, tag = 'output window, operand 0']
    #allocation3 [shape = 's32[2]{0}', space=sflag, size = 0x8, scoped, tag = 'scoped memory for tpu_custom_call.1']
    %9 = vsyncpa [#allocation3], 0
    %s10 = scalar_lea.sflag [#allocation3], 1
    %11 = vsyncpa %s10, 0
    loop: start=0, step=1, limit=6
    $region2: #{tpu_custom_call.1} parent=1 // loop_pre_header
      _
    $region3: #{tpu_custom_call.1} parent=1 // loop_header
      %s13 = sphi 0, %s17
      %p14 = scmp.ge.s32.totalorder %s13, 6
      %s20 = sphi 0, %s32
      %s21 = sphi 0, %s28
      %s22 = sphi 0, %s20
      %s23 = sphi 0, %s21
      %s24 = sphi 0, %s22
      %s25 = sphi 0, %s23
      %s35 = sphi 0, %s37
      %s38 = sphi 0, %s35
      %s39 = sphi 0, %s38
      %s55 = sphi 0, %s39
      %s59 = sphi 0, %s59
      %s61 = sphi 0, %s59
      %s62 = sphi 0, %s61
      %s76 = sphi 0, %s62
      %s80 = sphi 0, %s80
      %s82 = sphi 0, %s80
      %s83 = sphi 0, %s82
      %s97 = sphi 0, %s83
      %s101 = sphi 0, %s101
      %s103 = sphi 0, %s101
      %s104 = sphi 0, %s103
      %s118 = sphi 0, %s104
      %s126 = sphi 0, %s128
      %s129 = sphi 0, %s126
      %s130 = sphi 0, %s129
      %s146 = sphi 0, %s130
    $region4: #{tpu_custom_call.1} parent=1 // loop_header_branch
      %16 = sbr.rel (%p14) target = $region8
    $region5: #{tpu_custom_call.1} parent=1 // loop_body
      %s18 = ssub.s32 %s13, 1
      %s19 = ssub.s32 %s13, 2
      %s26 = sadd.s32 1, %s21
      %p27 = scmp.ge.s32.totalorder %s26, 2
      %s28 = scalar_select %p27, 0, %s26
      %s29 = sadd.s32 1, %s20
      %s30 = scalar_select %p27, %s29, %s20
      %p31 = scmp.ge.s32.totalorder %s30, 2
      %s32 = scalar_select %p31, 0, %s30
      %s33 = ssub.s32 %s20, %s32
      %p34 = scmp.eq.s32.totalorder %s33, 0
      %s36 = sadd.s32 %s35, 1
      %s37 = scalar_select %p34, %s35, %s36
      %p40 = pneg %p34
      %p41 = scmp.eq.s32.totalorder %s13, 3
      %p42 = por %p40, %p41
      %p43 = scmp.ne.s32.totalorder %s35, %s38
      %p44 = scmp.eq.s32.totalorder %s13, 0
      %p45 = por %p43, %p44
      %p46 = scmp.ne.s32.totalorder %s35, %s38
      %p47 = scmp.eq.s32.totalorder %s18, 3
      %p48 = por %p46, %p47
      %p49 = scmp.ne.s32.totalorder %s38, %s39
      %p50 = scmp.eq.s32.totalorder %s18, 0
      %p51 = por %p49, %p50
      %p52 = scmp.ne.s32.totalorder %s38, %s39
      %p53 = scmp.eq.s32.totalorder %s19, 3
      %p54 = por %p52, %p53
      %p56 = scmp.ne.s32.totalorder %s39, %s55
      %p57 = scmp.eq.s32.totalorder %s19, 0
      %p58 = por %p56, %p57
      %s60 = sadd.s32 %s59, 1
      %p63 = scmp.eq.s32.totalorder %s13, 3
      %p64 = scmp.ne.s32.totalorder %s59, %s61
      %p65 = scmp.eq.s32.totalorder %s13, 0
      %p66 = por %p64, %p65
      %p67 = scmp.ne.s32.totalorder %s59, %s61
      %p68 = scmp.eq.s32.totalorder %s18, 3
      %p69 = por %p67, %p68
      %p70 = scmp.ne.s32.totalorder %s61, %s62
      %p71 = scmp.eq.s32.totalorder %s18, 0
      %p72 = por %p70, %p71
      %p73 = scmp.ne.s32.totalorder %s61, %s62
      %p74 = scmp.eq.s32.totalorder %s19, 3
      %p75 = por %p73, %p74
      %p77 = scmp.ne.s32.totalorder %s62, %s76
      %p78 = scmp.eq.s32.totalorder %s19, 0
      %p79 = por %p77, %p78
      %s81 = sadd.s32 %s80, 1
      %p84 = scmp.eq.s32.totalorder %s13, 3
      %p85 = scmp.ne.s32.totalorder %s80, %s82
      %p86 = scmp.eq.s32.totalorder %s13, 0
      %p87 = por %p85, %p86
      %p88 = scmp.ne.s32.totalorder %s80, %s82
      %p89 = scmp.eq.s32.totalorder %s18, 3
      %p90 = por %p88, %p89
      %p91 = scmp.ne.s32.totalorder %s82, %s83
      %p92 = scmp.eq.s32.totalorder %s18, 0
      %p93 = por %p91, %p92
      %p94 = scmp.ne.s32.totalorder %s82, %s83
      %p95 = scmp.eq.s32.totalorder %s19, 3
      %p96 = por %p94, %p95
      %p98 = scmp.ne.s32.totalorder %s83, %s97
      %p99 = scmp.eq.s32.totalorder %s19, 0
      %p100 = por %p98, %p99
      %s102 = sadd.s32 %s101, 1
      %p105 = scmp.eq.s32.totalorder %s13, 3
      %p106 = scmp.ne.s32.totalorder %s101, %s103
      %p107 = scmp.eq.s32.totalorder %s13, 0
      %p108 = por %p106, %p107
      %p109 = scmp.ne.s32.totalorder %s101, %s103
      %p110 = scmp.eq.s32.totalorder %s18, 3
      %p111 = por %p109, %p110
      %p112 = scmp.ne.s32.totalorder %s103, %s104
      %p113 = scmp.eq.s32.totalorder %s18, 0
      %p114 = por %p112, %p113
      %p115 = scmp.ne.s32.totalorder %s103, %s104
      %p116 = scmp.eq.s32.totalorder %s19, 3
      %p117 = por %p115, %p116
      %p119 = scmp.ne.s32.totalorder %s104, %s118
      %p120 = scmp.eq.s32.totalorder %s19, 0
      %p121 = por %p119, %p120
      %s122 = ssub.s32 %s20, %s32
      %s123 = ssub.s32 %s21, %s28
      %s124 = sor.u32 %s122, %s123
      %p125 = scmp.eq.s32.totalorder %s124, 0
      %s127 = sadd.s32 %s126, 1
      %s128 = scalar_select %p125, %s126, %s127
      %p131 = pneg %p125
      %p132 = scmp.eq.s32.totalorder %s13, 3
      %p133 = por %p131, %p132
      %p134 = scmp.ne.s32.totalorder %s126, %s129
      %p135 = scmp.eq.s32.totalorder %s13, 0
      %p136 = por %p134, %p135
      %p137 = scmp.ne.s32.totalorder %s126, %s129
      %p138 = scmp.eq.s32.totalorder %s18, 3
      %p139 = por %p137, %p138
      %p140 = scmp.ne.s32.totalorder %s129, %s130
      %p141 = scmp.eq.s32.totalorder %s18, 0
      %p142 = por %p140, %p141
      %p143 = scmp.ne.s32.totalorder %s129, %s130
      %p144 = scmp.eq.s32.totalorder %s19, 3
      %p145 = por %p143, %p144
      %p147 = scmp.ne.s32.totalorder %s130, %s146
      %p148 = scmp.eq.s32.totalorder %s19, 0
      %p149 = por %p147, %p148
      %p150 = scmp.le.s32.totalorder 1, %s13
      %p151 = scmp.lt.s32.totalorder %s13, 5
      %p152 = pnand %p150, %p151
      %p153 = pneg %p152
      // Predicated region
      $region9: #{tpu_custom_call.1} parent=5 // pred_check
        _
      $region10: #{tpu_custom_call.1} parent=5 // pred_check_branch
        %155 = sbr.rel (%p152) target = $region12
      $region11: #{tpu_custom_call.1} parent=5 // pred_region
        %s156 = ssub.s32 %s13, 1
        // Predicated region
        $region13: #{tpu_custom_call.1} parent=11 // pred_check
          %p157 = pneg %p72
        $region14: #{tpu_custom_call.1} parent=11 // pred_check_branch
          %159 = sbr.rel (%p157) target = $region16
        $region15: #{tpu_custom_call.1} parent=11 // pred_region
          _
        $region16: #{tpu_custom_call.1} parent=11 // pred_fallthru
          _
        // Predicated region
        $region17: #{tpu_custom_call.1} parent=11 // pred_check
          %p160 = pneg %p93
        $region18: #{tpu_custom_call.1} parent=11 // pred_check_branch
          %162 = sbr.rel (%p160) target = $region20
        $region19: #{tpu_custom_call.1} parent=11 // pred_region
          _
        $region20: #{tpu_custom_call.1} parent=11 // pred_fallthru
          _
        // Predicated region
        $region21: #{tpu_custom_call.1} parent=11 // pred_check
          %p163 = pneg %p114
        $region22: #{tpu_custom_call.1} parent=11 // pred_check_branch
          %165 = sbr.rel (%p163) target = $region24
        $region23: #{tpu_custom_call.1} parent=11 // pred_region
          _
        $region24: #{tpu_custom_call.1} parent=11 // pred_fallthru
          _
      $region12: #{tpu_custom_call.1} parent=5 // pred_fallthru
        _
      %p166 = scmp.lt.s32.totalorder %s13, 4
      // Predicated region
      $region25: #{tpu_custom_call.1} parent=5 // pred_check
        %p167 = pneg %p166
      $region26: #{tpu_custom_call.1} parent=5 // pred_check_branch
        %169 = sbr.rel (%p167) target = $region28
      $region27: #{tpu_custom_call.1} parent=5 // pred_region
        // Predicated region
        $region29: #{tpu_custom_call.1} parent=27 // pred_check
          %p170 = pneg %p45
        $region30: #{tpu_custom_call.1} parent=27 // pred_check_branch
          %172 = sbr.rel (%p170) target = $region32
        $region31: #{tpu_custom_call.1} parent=27 // pred_region
          %p173 = scmp.lt.s32.totalorder %s20, 1
          %s174 = scalar_select %p173, %s20, 1
          %s175 = smul.addr %s174, 12
          %s176 = smul.addr %s175, 8
          %s177 = scalar_lea.vmem %s0, %s176
        $region32: #{tpu_custom_call.1} parent=27 // pred_fallthru
          _
      $region28: #{tpu_custom_call.1} parent=5 // pred_fallthru
        _
      %p178 = scmp.le.s32.totalorder 1, %s13
      %p179 = scmp.lt.s32.totalorder %s13, 5
      %p180 = pnand %p178, %p179
      %p181 = pneg %p180
      // Predicated region
      $region33: #{tpu_custom_call.1} parent=5 // pred_check
        _
      $region34: #{tpu_custom_call.1} parent=5 // pred_check_branch
        %183 = sbr.rel (%p180) target = $region36
      $region35: #{tpu_custom_call.1} parent=5 // pred_region
        %s184 = ssub.s32 %s13, 1
        %p185 = scmp.lt.s32.totalorder %s22, 1
        %s186 = scalar_select %p185, %s22, 1
        %s187 = smul.addr %s186, 12
        %s188 = smul.addr %s187, 8
        %s189 = scalar_lea.vmem %s0, %s188
        %p190 = pneg %p51
        %p191 = pneg %p48
        %p192 = pneg %p72
        %p193 = pneg %p69
        %p194 = pneg %p93
        %p195 = pneg %p90
        %p196 = pneg %p114
        %p197 = pneg %p111
        %p198 = pneg %p142
        %p199 = pneg %p139
        %s200 = sand.u32 %s129, 1
        %s201 = scalar_lea.sflag [#allocation3], %s200
        %s202 = sand.u32 %s129, 1
        %s203 = smul.addr %s202, 32
        %s204 = scalar_lea.vmem [#allocation2], %s203
        %p205 = scmp.lt.s32.totalorder %s22, 1
        %s206 = scalar_select %p205, %s22, 1
        %s207 = smul.addr %s206, 12
        %s208 = smul.addr %s207, 8
        %s209 = scalar_lea.vmem %s0, %s208
        %s210 = smul.u32 %s23, 8
        %s211 = scalar_lea.vmem %s209, %s210
        %v212 = vld [vmem:[%s211] sm:$0xff]
        %v213 = vld [vmem:[%s211 + $0x8] sm:$0xff]
        %s214 = sadd.s32 %s210, 24
        %s215 = scalar_lea.vmem %s209, %s214
        %v216 = vld [vmem:[%s215] sm:$0xff]
        %v217 = vld [vmem:[%s215 + $0x8] sm:$0xff]
        %s218 = sadd.s32 %s210, 48
        %s219 = scalar_lea.vmem %s209, %s218
        %v220 = vld [vmem:[%s219] sm:$0xff]
        %v221 = vld [vmem:[%s219 + $0x8] sm:$0xff]
        %s222 = sadd.s32 %s210, 72
        %s223 = scalar_lea.vmem %s209, %s222
        %v224 = vld [vmem:[%s223] sm:$0xff]
        %v225 = vld [vmem:[%s223 + $0x8] sm:$0xff]
        %228 = vrot.lane.b32.xlu0 %v212, 127
        %v229 = vpop.permute.xlu0 %228
        %230 = vrot.lane.b32.xlu0 %v213, 127
        %v231 = vpop.permute.xlu0 %230
        %236 = vrot.lane.b32.xlu0 %v216, 127
        %v237 = vpop.permute.xlu0 %236
        %238 = vrot.lane.b32.xlu0 %v217, 127
        %v239 = vpop.permute.xlu0 %238
        %244 = vrot.lane.b32.xlu0 %v220, 127
        %v245 = vpop.permute.xlu0 %244
        %246 = vrot.lane.b32.xlu0 %v221, 127
        %v247 = vpop.permute.xlu0 %246
        %252 = vrot.lane.b32.xlu0 %v224, 127
        %v253 = vpop.permute.xlu0 %252
        %254 = vrot.lane.b32.xlu0 %v225, 127
        %v255 = vpop.permute.xlu0 %254
        %258 = vrot.lane.b32.xlu0 %v212, 126
        %v259 = vpop.permute.xlu0 %258
        %260 = vrot.lane.b32.xlu0 %v213, 126
        %v261 = vpop.permute.xlu0 %260
        %264 = vrot.lane.b32.xlu0 %v216, 126
        %v265 = vpop.permute.xlu0 %264
        %266 = vrot.lane.b32.xlu0 %v217, 126
        %v267 = vpop.permute.xlu0 %266
        %270 = vrot.lane.b32.xlu0 %v220, 126
        %v271 = vpop.permute.xlu0 %270
        %272 = vrot.lane.b32.xlu0 %v221, 126
        %v273 = vpop.permute.xlu0 %272
        %276 = vrot.lane.b32.xlu0 %v224, 126
        %v277 = vpop.permute.xlu0 %276
        %278 = vrot.lane.b32.xlu0 %v225, 126
        %v279 = vpop.permute.xlu0 %278
        %v282 = vld [vmem:[%s1] sm:$0xff]
        %v283 = vld [vmem:[%s1 + $0x8] sm:$0xff]
        %v284 = vld [vmem:[%s1 + $0x10] sm:$0xff]
        %v285 = vld [vmem:[%s1 + $0x18] sm:$0xff]
        %v286 = vld [vmem:[%s1 + $0x20] sm:$0xff]
        %v287 = vld [vmem:[%s1 + $0x28] sm:$0xff]
        %v288 = vld [vmem:[%s1 + $0x30] sm:$0xff]
        %v289 = vld [vmem:[%s1 + $0x38] sm:$0xff]
        %vm290 = vcmask 523264
        %v292 = vsel %vm290, %v283, 0
        %v295 = vsel %vm290, %v285, 0
        %v298 = vsel %vm290, %v287, 0
        %v301 = vsel %vm290, %v289, 0
        %303 = vmatpush.msra.mxu0 %v255
        %304 = vmatpush.msra.mxu0 %v253
        %305 = vmatpush.msra.mxu0 %v247
        %306 = vmatpush.msra.mxu0 %v245
        %307 = vmatpush.msra.mxu0 %v239
        %308 = vmatpush.msra.mxu0 %v237
        %309 = vmatpush.msra.mxu0 %v231
        %310 = vmatpush.msra.mxu0 %v229
        %311 = vmatpush.msra.mxu0 %v225
        %312 = vmatpush.msra.mxu0 %v224
        %313 = vmatpush.msra.mxu0 %v221
        %314 = vmatpush.msra.mxu0 %v220
        %315 = vmatpush.msra.mxu0 %v217
        %316 = vmatpush.msra.mxu0 %v216
        %317 = vmatpush.msra.mxu0 %v213
        %318 = vmatpush.msra.mxu0 %v212
        %319 = vmatmul.f32.gmra.mxu0 %v282
        %v320 = vpop.f32.mrf.mxu0
        %v321 = vadd.f32 0.0, %v320
        %322 = vmatmul.f32.gmra.mxu0 %v284
        %v323 = vpop.f32.mrf.mxu0
        %v324 = vadd.f32 0.0, %v323
        %325 = vmatmul.f32.gmra.mxu0 %v286
        %v326 = vpop.f32.mrf.mxu0
        %v327 = vadd.f32 0.0, %v326
        %328 = vmatmul.f32.gmra.mxu0 %v288
        %v329 = vpop.f32.mrf.mxu0
        %v330 = vadd.f32 0.0, %v329
        %331 = vdwg.mxu0
        %332 = vmatpush.msra.mxu0 0.0
        %333 = vmatpush.msra.mxu0 0.0
        %334 = vmatpush.msra.mxu0 0.0
        %335 = vmatpush.msra.mxu0 0.0
        %336 = vmatpush.msra.mxu0 0.0
        %337 = vmatpush.msra.mxu0 0.0
        %338 = vmatpush.msra.mxu0 0.0
        %339 = vmatpush.msra.mxu0 0.0
        %340 = vmatpush.msra.mxu0 %v279
        %341 = vmatpush.msra.mxu0 %v277
        %342 = vmatpush.msra.mxu0 %v273
        %343 = vmatpush.msra.mxu0 %v271
        %344 = vmatpush.msra.mxu0 %v267
        %345 = vmatpush.msra.mxu0 %v265
        %346 = vmatpush.msra.mxu0 %v261
        %347 = vmatpush.msra.mxu0 %v259
        %348 = vmatmul.f32.gmra.mxu0 %v292
        %v349 = vpop.f32.mrf.mxu0
        %v350 = vadd.f32 %v321, %v349
        %351 = vmatmul.f32.gmra.mxu0 %v295
        %v352 = vpop.f32.mrf.mxu0
        %v353 = vadd.f32 %v324, %v352
        %354 = vmatmul.f32.gmra.mxu0 %v298
        %v355 = vpop.f32.mrf.mxu0
        %v356 = vadd.f32 %v327, %v355
        %357 = vmatmul.f32.gmra.mxu0 %v301
        %v358 = vpop.f32.mrf.mxu0
        %v359 = vadd.f32 %v330, %v358
        %360 = vdwg.mxu0
        %s361 = scalar_lea.vmem %s1, 64
        %v362 = vld [vmem:[%s361] sm:$0xff]
        %v363 = vld [vmem:[%s361 + $0x8] sm:$0xff]
        %v364 = vld [vmem:[%s361 + $0x10] sm:$0xff]
        %v365 = vld [vmem:[%s361 + $0x18] sm:$0xff]
        %v366 = vld [vmem:[%s361 + $0x20] sm:$0xff]
        %v367 = vld [vmem:[%s361 + $0x28] sm:$0xff]
        %v368 = vld [vmem:[%s361 + $0x30] sm:$0xff]
        %v369 = vld [vmem:[%s361 + $0x38] sm:$0xff]
        %v371 = vsel %vm290, %v363, 0
        %v374 = vsel %vm290, %v365, 0
        %v377 = vsel %vm290, %v367, 0
        %v380 = vsel %vm290, %v369, 0
        %382 = vmatpush.msra.mxu0 %v255
        %383 = vmatpush.msra.mxu0 %v253
        %384 = vmatpush.msra.mxu0 %v247
        %385 = vmatpush.msra.mxu0 %v245
        %386 = vmatpush.msra.mxu0 %v239
        %387 = vmatpush.msra.mxu0 %v237
        %388 = vmatpush.msra.mxu0 %v231
        %389 = vmatpush.msra.mxu0 %v229
        %390 = vmatpush.msra.mxu0 %v225
        %391 = vmatpush.msra.mxu0 %v224
        %392 = vmatpush.msra.mxu0 %v221
        %393 = vmatpush.msra.mxu0 %v220
        %394 = vmatpush.msra.mxu0 %v217
        %395 = vmatpush.msra.mxu0 %v216
        %396 = vmatpush.msra.mxu0 %v213
        %397 = vmatpush.msra.mxu0 %v212
        %398 = vmatmul.f32.gmra.mxu0 %v362
        %v399 = vpop.f32.mrf.mxu0
        %v400 = vadd.f32 0.0, %v399
        %401 = vmatmul.f32.gmra.mxu0 %v364
        %v402 = vpop.f32.mrf.mxu0
        %v403 = vadd.f32 0.0, %v402
        %404 = vmatmul.f32.gmra.mxu0 %v366
        %v405 = vpop.f32.mrf.mxu0
        %v406 = vadd.f32 0.0, %v405
        %407 = vmatmul.f32.gmra.mxu0 %v368
        %v408 = vpop.f32.mrf.mxu0
        %v409 = vadd.f32 0.0, %v408
        %410 = vdwg.mxu0
        %411 = vmatpush.msra.mxu0 0.0
        %412 = vmatpush.msra.mxu0 0.0
        %413 = vmatpush.msra.mxu0 0.0
        %414 = vmatpush.msra.mxu0 0.0
        %415 = vmatpush.msra.mxu0 0.0
        %416 = vmatpush.msra.mxu0 0.0
        %417 = vmatpush.msra.mxu0 0.0
        %418 = vmatpush.msra.mxu0 0.0
        %419 = vmatpush.msra.mxu0 %v279
        %420 = vmatpush.msra.mxu0 %v277
        %421 = vmatpush.msra.mxu0 %v273
        %422 = vmatpush.msra.mxu0 %v271
        %423 = vmatpush.msra.mxu0 %v267
        %424 = vmatpush.msra.mxu0 %v265
        %425 = vmatpush.msra.mxu0 %v261
        %426 = vmatpush.msra.mxu0 %v259
        %427 = vmatmul.f32.gmra.mxu0 %v371
        %v428 = vpop.f32.mrf.mxu0
        %v429 = vadd.f32 %v400, %v428
        %430 = vmatmul.f32.gmra.mxu0 %v374
        %v431 = vpop.f32.mrf.mxu0
        %v432 = vadd.f32 %v403, %v431
        %433 = vmatmul.f32.gmra.mxu0 %v377
        %v434 = vpop.f32.mrf.mxu0
        %v435 = vadd.f32 %v406, %v434
        %436 = vmatmul.f32.gmra.mxu0 %v380
        %v437 = vpop.f32.mrf.mxu0
        %v438 = vadd.f32 %v409, %v437
        %439 = vdwg.mxu0
        %v440 = vld [vmem:[%s2] sm:$0xff]
        %v441 = vld [vmem:[%s2 + $0x8] sm:$0xff]
        %s442 = scalar_lea.vmem %s2, 16
        %v443 = vld [vmem:[%s442] sm:$0xff]
        %v444 = vld [vmem:[%s442 + $0x8] sm:$0xff]
        %vm445 = vcmask 130048
        %v447 = vsel %vm445, %v429, 0
        %v450 = vsel %vm445, %v432, 0
        %v453 = vsel %vm445, %v435, 0
        %v456 = vsel %vm445, %v438, 0
        %458 = vmatpush.msra.mxu0 0.0
        %459 = vmatpush.msra.mxu0 0.0
        %460 = vmatpush.msra.mxu0 0.0
        %461 = vmatpush.msra.mxu0 0.0
        %462 = vmatpush.msra.mxu0 0.0
        %463 = vmatpush.msra.mxu0 0.0
        %464 = vmatpush.msra.mxu0 0.0
        %465 = vmatpush.msra.mxu0 0.0
        %466 = vmatpush.msra.mxu0 0.0
        %467 = vmatpush.msra.mxu0 0.0
        %468 = vmatpush.msra.mxu0 0.0
        %469 = vmatpush.msra.mxu0 0.0
        %470 = vmatpush.msra.mxu0 0.0
        %471 = vmatpush.msra.mxu0 0.0
        %472 = vmatpush.msra.mxu0 %v444
        %473 = vmatpush.msra.mxu0 %v443
        %474 = vmatmul.f32.gmra.mxu0 %v447
        %v475 = vpop.f32.mrf.mxu0
        %v476 = vadd.f32 0.0, %v475
        %477 = vmatmul.f32.gmra.mxu0 %v450
        %v478 = vpop.f32.mrf.mxu0
        %v479 = vadd.f32 0.0, %v478
        %480 = vmatmul.f32.gmra.mxu0 %v453
        %v481 = vpop.f32.mrf.mxu0
        %v482 = vadd.f32 0.0, %v481
        %483 = vmatmul.f32.gmra.mxu0 %v456
        %v484 = vpop.f32.mrf.mxu0
        %v485 = vadd.f32 0.0, %v484
        %486 = vdwg.mxu0
        %v488 = vsel %vm445, %v350, 0
        %v491 = vsel %vm445, %v353, 0
        %v494 = vsel %vm445, %v356, 0
        %v497 = vsel %vm445, %v359, 0
        %499 = vmatpush.msra.mxu0 0.0
        %500 = vmatpush.msra.mxu0 0.0
        %501 = vmatpush.msra.mxu0 0.0
        %502 = vmatpush.msra.mxu0 0.0
        %503 = vmatpush.msra.mxu0 0.0
        %504 = vmatpush.msra.mxu0 0.0
        %505 = vmatpush.msra.mxu0 0.0
        %506 = vmatpush.msra.mxu0 0.0
        %507 = vmatpush.msra.mxu0 0.0
        %508 = vmatpush.msra.mxu0 0.0
        %509 = vmatpush.msra.mxu0 0.0
        %510 = vmatpush.msra.mxu0 0.0
        %511 = vmatpush.msra.mxu0 0.0
        %512 = vmatpush.msra.mxu0 0.0
        %513 = vmatpush.msra.mxu0 %v441
        %514 = vmatpush.msra.mxu0 %v440
        %515 = vmatmul.f32.gmra.mxu0 %v488
        %v516 = vpop.f32.mrf.mxu0
        %v517 = vadd.f32 %v476, %v516
        %518 = vmatmul.f32.gmra.mxu0 %v491
        %v519 = vpop.f32.mrf.mxu0
        %v520 = vadd.f32 %v479, %v519
        %521 = vmatmul.f32.gmra.mxu0 %v494
        %v522 = vpop.f32.mrf.mxu0
        %v523 = vadd.f32 %v482, %v522
        %524 = vmatmul.f32.gmra.mxu0 %v497
        %v525 = vpop.f32.mrf.mxu0
        %v526 = vadd.f32 %v485, %v525
        %527 = vdwg.mxu0
        %v528 = vld [vmem:[%s3] sm:$0xff]
        %v529 = vld [vmem:[%s3 + $0x8] sm:$0xff]
        %v530 = vld [vmem:[%s3 + $0x10] sm:$0xff]
        %v531 = vld [vmem:[%s3 + $0x18] sm:$0xff]
        %v532 = vadd.f32 %v517, %v528
        %v533 = vadd.f32 %v520, %v529
        %v534 = vadd.f32 %v523, %v530
        %v535 = vadd.f32 %v526, %v531
        %vm536 = vcmask 261120
        %537 = vst.msk [vmem:[%s204] sm:$0xff] %vm536, %v532
        %s538 = scalar_lea.vmem %s204, 8 [#allocation2]
        %539 = vst.msk [vmem:[%s538] sm:$0xff] %vm536, %v533
        %s540 = scalar_lea.vmem %s204, 16 [#allocation2]
        %541 = vst.msk [vmem:[%s540] sm:$0xff] %vm536, %v534
        %s542 = scalar_lea.vmem %s204, 24 [#allocation2]
        %543 = vst.msk [vmem:[%s542] sm:$0xff] %vm536, %v535
        %s544 = sand.u32 %s129, 1
        %s545 = scalar_lea.sflag [#allocation3], %s544
        %s546 = sand.u32 %s129, 1
        %s547 = smul.addr %s546, 32
        %s548 = scalar_lea.vmem [#allocation2], %s547
        // Predicated region
        $region37: #{tpu_custom_call.1} parent=35 // pred_check
          %p549 = pneg %p139
        $region38: #{tpu_custom_call.1} parent=35 // pred_check_branch
          %551 = sbr.rel (%p549) target = $region40
        $region39: #{tpu_custom_call.1} parent=35 // pred_region
          %553 = vsyncadd %s545, 0
          %s554 = smul.addr %s22, 8
          %s555 = sadd.s32 %s23, %s554
          %s556 = smul.addr %s555, 8
          %s557 = scalar_lea.hbm %s4, %s556
          %s558 = sshll.u32 %s548, 4
          %s559 = int_to_ptr.vmem [resolvable:$true] %s558
          %s560 = sshll.u32 %s557, 4
          %s561 = int_to_ptr.hbm [resolvable:$true] %s560
          %566 = dma.vmem_to_hbm [thread:$0]  %s559, 512, %s561, %s545, 128, 256, 8
        $region40: #{tpu_custom_call.1} parent=35 // pred_fallthru
          _
      $region36: #{tpu_custom_call.1} parent=5 // pred_fallthru
        _
      %p567 = scmp.le.s32.totalorder 2, %s13
      // Predicated region
      $region41: #{tpu_custom_call.1} parent=5 // pred_check
        %p568 = pneg %p567
      $region42: #{tpu_custom_call.1} parent=5 // pred_check_branch
        %570 = sbr.rel (%p568) target = $region44
      $region43: #{tpu_custom_call.1} parent=5 // pred_region
        %s571 = ssub.s32 %s13, 2
        // Predicated region
        $region45: #{tpu_custom_call.1} parent=43 // pred_check
          %p572 = pneg %p145
        $region46: #{tpu_custom_call.1} parent=43 // pred_check_branch
          %574 = sbr.rel (%p572) target = $region48
        $region47: #{tpu_custom_call.1} parent=43 // pred_region
          %s575 = sand.u32 %s130, 1
          %s576 = scalar_lea.sflag [#allocation3], %s575
          %s577 = sand.u32 %s130, 1
          %s578 = smul.addr %s577, 32
          %s579 = scalar_lea.vmem [#allocation2], %s578
          %581 = dma.done %s576, 512
        $region48: #{tpu_custom_call.1} parent=43 // pred_fallthru
          _
      $region44: #{tpu_custom_call.1} parent=5 // pred_fallthru
        _
    $region6: #{tpu_custom_call.1} parent=1 // loop_footer
      %s17 = sadd.s32 1, %s13
    $region7: #{tpu_custom_call.1} parent=1 // loop_footer_branch
      %12 = sbr.rel target = $region3
    $region8: #{tpu_custom_call.1} parent=1 // loop_exit
      _
    %582 = vsyncpa [#allocation3], 1
    %s583 = scalar_lea.sflag [#allocation3], 1
    %584 = vsyncpa %s583, 1

</llo_original>
